<compile_context>
chip_gen: v7x
topology: tpu7x:2x2x1
jax: 0.10.0
libtpu: 0.0.40
codegen_flags: <defaults>
</compile_context>

<pallas_src>
import math

import jax
import jax.numpy as jnp
from jax.experimental import pallas as pl
from jax.experimental.pallas import tpu as pltpu


def _anomaly_kernel(x1_ref, x2_ref, vblk1_ref, vblk2_ref, ones_ref, bias_ref, o_ref):
    """Lane-packed tiles: packed row i holds R original rows.

    d[i, j] = x_row(i*R+j) . v        via block-diagonal Vblk   (MXU, R-wide)
    s[i, j] = ||x_row(i*R+j)||^2      via block-diagonal OnesBlk (MXU, R-wide)
    out     = d1*rsqrt(max(s1,eps^2)) + d2*rsqrt(max(s2,eps^2)) + bias
    """
    eps2 = jnp.float32(1e-24)  # F.normalize eps (1e-12), squared

    x1 = x1_ref[...]
    x2 = x2_ref[...]

    d1 = jnp.dot(x1, vblk1_ref[...], preferred_element_type=jnp.float32)   # (tp, R)
    d2 = jnp.dot(x2, vblk2_ref[...], preferred_element_type=jnp.float32)   # (tp, R)
    s1 = jnp.dot(x1 * x1, ones_ref[...], preferred_element_type=jnp.float32)
    s2 = jnp.dot(x2 * x2, ones_ref[...], preferred_element_type=jnp.float32)

    r1 = jax.lax.rsqrt(jnp.maximum(s1, eps2))
    r2 = jax.lax.rsqrt(jnp.maximum(s2, eps2))

    o_ref[...] = (d1 * r1 + d2 * r2 + bias_ref[0]).astype(o_ref.dtype)


def anomaly_layer_forward(x1, x2, w1, b1, w2, b2, *, tile_packed=8192):
    """x1, x2: (N, dim); w1: (dim, 2*dim); b1: (dim,); w2: (1, dim); b2: (1,)."""
    n, dim = x1.shape
    assert x2.shape == (n, dim)
    assert w1.shape == (dim, 2 * dim)
    assert b1.shape == (dim,)
    assert w2.shape == (1, dim)
    assert b2.shape == (1,)

    if x1.dtype != jnp.float32:
        x1 = x1.astype(jnp.float32)
    if x2.dtype != jnp.float32:
        x2 = x2.astype(jnp.float32)

    # --- Fold the 1-wide second linear into the first (exact) ----------------
    v_row = (w2 @ w1).reshape(2 * dim).astype(jnp.float32)          # (2*dim,)
    v1 = v_row[:dim]
    v2 = v_row[dim:]
    bias = (b1 @ jnp.transpose(w2) + b2).reshape(1).astype(jnp.float32)  # (1,) SMEM

    # --- Lane-dense packing: fold R original rows into one 128-lane row ------
    lanes = 128
    r = lanes // dim if (dim < lanes and lanes % dim == 0) else 1
    pw = r * dim                                                    # packed width

    if n % r:
        # Only hit when N is not a multiple of R; zero rows produce out=bias and
        # are sliced off below.  (jnp.pad copies x1/x2 once in HBM.)
        pad = r - (n % r)
        x1 = jnp.pad(x1, ((0, pad), (0, 0)))
        x2 = jnp.pad(x2, ((0, pad), (0, 0)))
    n_pad = x1.shape[0]
    n_packed = n_pad // r

    # Free, contiguous reshape: packed row i holds original rows i*r .. i*r+r-1.
    x1p = x1.reshape(n_packed, pw)
    x2p = x2.reshape(n_packed, pw)

    # Block-diagonal fused weights: column j carries v (or ones) in lanes
    # [j*dim, (j+1)*dim) and zeros elsewhere, so a single (tp, pw) @ (pw, r)
    # matmul yields per-original-row dots / sums-of-squares.
    eye_r = jnp.eye(r, dtype=jnp.float32)
    vblk1 = jnp.kron(eye_r, v1.reshape(dim, 1))                     # (pw, r)
    vblk2 = jnp.kron(eye_r, v2.reshape(dim, 1))                     # (pw, r)
    ones_blk = jnp.kron(eye_r, jnp.ones((dim, 1), jnp.float32))     # (pw, r)

    # --- Batch tile (in packed rows) ------------------------------------------
    tp = min(tile_packed, n_packed)
    if tp < n_packed:
        # Large batch: prefer >= ~8 grid steps (v7x megacore sharding + pipeline
        # depth) but never shrink a step below ~2 MiB of HBM traffic.
        tp = min(tp, max(2048, pl.cdiv(n_packed, 8)))
        tp = max(8, (tp // 8) * 8)
    grid = (pl.cdiv(n_packed, tp),)

    out_p = pl.pallas_call(
        _anomaly_kernel,
        out_shape=jax.ShapeDtypeStruct((n_packed, r), jnp.float32),
        grid_spec=pl.GridSpec(
            grid=grid,
            in_specs=[
                pl.BlockSpec((tp, pw), lambda i: (i, 0)),   # x1 tile (pipelined)
                pl.BlockSpec((tp, pw), lambda i: (i, 0)),   # x2 tile (pipelined)
                pl.BlockSpec((pw, r), lambda i: (0, 0)),    # Vblk1 (VMEM-resident)
                pl.BlockSpec((pw, r), lambda i: (0, 0)),    # Vblk2 (VMEM-resident)
                pl.BlockSpec((pw, r), lambda i: (0, 0)),    # OnesBlk (VMEM-resident)
                pl.BlockSpec(memory_space=pltpu.MemorySpace.SMEM),  # fused bias
            ],
            out_specs=pl.BlockSpec((tp, r), lambda i: (i, 0)),
        ),
        compiler_params=pltpu.CompilerParams(
            dimension_semantics=("parallel",),      # megacore-shard batch on v7x
            vmem_limit_bytes=48 * 1024 * 1024,      # >16 MiB v5e default, <64 MiB v7x
        ),
    )(x1p, x2p, vblk1, vblk2, ones_blk, bias)

    out = out_p.reshape(n_pad, 1)                   # (i, j) -> original row i*r + j
    return out[:n] if n_pad != n else out


def init_params(key, dim):
    """kaiming_normal_ (fan_in, gain=sqrt(2)) weights, zero biases."""
    k1, k2 = jax.random.split(key)
    w1 = jax.random.normal(k1, (dim, 2 * dim), jnp.float32) * (math.sqrt(2.0) / math.sqrt(2 * dim))
    b1 = jnp.zeros((dim,), jnp.float32)
    w2 = jax.random.normal(k2, (1, dim), jnp.float32) * (math.sqrt(2.0) / math.sqrt(dim))
    b2 = jnp.zeros((1,), jnp.float32)
    return w1, b1, w2, b2


def _reference(x1, x2, w1, b1, w2, b2):
    eps = 1e-12
    x1n = x1 / jnp.maximum(jnp.linalg.norm(x1, axis=1, keepdims=True), eps)
    x2n = x2 / jnp.maximum(jnp.linalg.norm(x2, axis=1, keepdims=True), eps)
    c = jnp.concatenate([x1n, x2n], axis=1)
    c = c @ w1.T + b1
    c = c @ w2.T + b2
    return c


if __name__ == "__main__":
    fwd = jax.jit(anomaly_layer_forward, static_argnames=("tile_packed",))

    key = jax.random.PRNGKey(0)
    kx1, kx2, kp = jax.random.split(key, 3)

    # --- dim = 32: lane-packed path (R = 4) -----------------------------------
    dim = 32
    w1, b1, w2, b2 = init_params(kp, dim)

    # Small batch, single grid step.
    x1 = jax.random.normal(kx1, (8, dim), jnp.float32)
    x2 = jax.random.normal(kx2, (8, dim), jnp.float32)
    out = jax.block_until_ready(fwd(x1, x2, w1, b1, w2, b2))
    ref = _reference(x1, x2, w1, b1, w2, b2)
    assert out.shape == (8, 1)
    assert jnp.allclose(out, ref, atol=1e-5, rtol=1e-5)

    # Batch not a multiple of R (exercises pad + slice path).
    x1b = jax.random.normal(kx1, (10, dim), jnp.float32)
    x2b = jax.random.normal(kx2, (10, dim), jnp.float32)
    out = jax.block_until_ready(fwd(x1b, x2b, w1, b1, w2, b2))
    ref = _reference(x1b, x2b, w1, b1, w2, b2)
    assert out.shape == (10, 1)
    assert jnp.allclose(out, ref, atol=1e-5, rtol=1e-5)

    # Multi-tile grid with a ragged last block (exercises pipelining + masking).
    kx3, kx4 = jax.random.split(kx1)
    x1c = jax.random.normal(kx3, (1000, dim), jnp.float32)
    x2c = jax.random.normal(kx4, (1000, dim), jnp.float32)
    out = jax.block_until_ready(fwd(x1c, x2c, w1, b1, w2, b2, tile_packed=64))
    ref = _reference(x1c, x2c, w1, b1, w2, b2)
    assert out.shape == (1000, 1)
    assert jnp.allclose(out, ref, atol=1e-5, rtol=1e-5)

    # --- dim that does not divide 128: R = 1 fallback path --------------------
    dim2 = 40
    w1b, b1b, w2b, b2b = init_params(jax.random.fold_in(kp, 1), dim2)
    x1d = jax.random.normal(kx3, (16, dim2), jnp.float32)
    x2d = jax.random.normal(kx4, (16, dim2), jnp.float32)
    out = jax.block_until_ready(fwd(x1d, x2d, w1b, b1b, w2b, b2b))
    ref = _reference(x1d, x2d, w1b, b1b, w2b, b2b)
    assert out.shape == (16, 1)
    assert jnp.allclose(out, ref, atol=1e-5, rtol=1e-5)

    print("KERNEL_OK")
</pallas_src>

<mosaic_0001>
module attributes {stable_mosaic.version = 11 : i64} {
  func.func @_anomaly_kernel(%arg0: i32, %arg1: memref<2x128xf32, #tpu.memory_space<vmem>>, %arg2: memref<2x128xf32, #tpu.memory_space<vmem>>, %arg3: memref<128x4xf32, #tpu.memory_space<vmem>>, %arg4: memref<128x4xf32, #tpu.memory_space<vmem>>, %arg5: memref<128x4xf32, #tpu.memory_space<vmem>>, %arg6: memref<1xf32, #tpu.memory_space<smem>>, %arg7: memref<2x4xf32, #tpu.memory_space<vmem>>) attributes {dimension_semantics = [#tpu.dimension_semantics<parallel>], iteration_bounds = array<i64: 1>, scalar_prefetch = 0 : i64, scratch_operands = 0 : i64, tpu.core_type = #tpu.core_type<tc>, window_params = [{transform_indices = @transform_0, window_bounds = array<i64: 2, 128>}, {transform_indices = @transform_1, window_bounds = array<i64: 2, 128>}, {pipeline_mode = #tpu.pipeline_mode<synchronous>, transform_indices = @transform_2, window_bounds = array<i64: 128, 4>}, {pipeline_mode = #tpu.pipeline_mode<synchronous>, transform_indices = @transform_3, window_bounds = array<i64: 128, 4>}, {pipeline_mode = #tpu.pipeline_mode<synchronous>, transform_indices = @transform_4, window_bounds = array<i64: 128, 4>}, {transform_indices = @transform_5, window_bounds = array<i64: 1>}, {transform_indices = @transform_6, window_bounds = array<i64: 2, 4>}]} {
    %c0 = arith.constant 0 : index
    %c0_0 = arith.constant 0 : index
    %0 = vector.load %arg1[%c0, %c0_0] : memref<2x128xf32, #tpu.memory_space<vmem>>, vector<2x128xf32>
    %c0_1 = arith.constant 0 : index
    %c0_2 = arith.constant 0 : index
    %1 = vector.load %arg2[%c0_1, %c0_2] : memref<2x128xf32, #tpu.memory_space<vmem>>, vector<2x128xf32>
    %c0_3 = arith.constant 0 : index
    %c0_4 = arith.constant 0 : index
    %2 = vector.load %arg3[%c0_3, %c0_4] : memref<128x4xf32, #tpu.memory_space<vmem>>, vector<128x4xf32>
    %cst = arith.constant dense<0.000000e+00> : vector<2x4xf32>
    %3 = tpu.matmul %0, %2, %cst {dimension_numbers = #tpu.dot_dimension_numbers<[1], [0], [0], [1], [0, 0, 1, 1], [], []>} : vector<2x128xf32>, vector<128x4xf32>, vector<2x4xf32> -> vector<2x4xf32>
    %c0_5 = arith.constant 0 : index
    %c0_6 = arith.constant 0 : index
    %4 = vector.load %arg4[%c0_5, %c0_6] : memref<128x4xf32, #tpu.memory_space<vmem>>, vector<128x4xf32>
    %cst_7 = arith.constant dense<0.000000e+00> : vector<2x4xf32>
    %5 = tpu.matmul %1, %4, %cst_7 {dimension_numbers = #tpu.dot_dimension_numbers<[1], [0], [0], [1], [0, 0, 1, 1], [], []>} : vector<2x128xf32>, vector<128x4xf32>, vector<2x4xf32> -> vector<2x4xf32>
    %6 = arith.mulf %0, %0 : vector<2x128xf32>
    %c0_8 = arith.constant 0 : index
    %c0_9 = arith.constant 0 : index
    %7 = vector.load %arg5[%c0_8, %c0_9] : memref<128x4xf32, #tpu.memory_space<vmem>>, vector<128x4xf32>
    %cst_10 = arith.constant dense<0.000000e+00> : vector<2x4xf32>
    %8 = tpu.matmul %6, %7, %cst_10 {dimension_numbers = #tpu.dot_dimension_numbers<[1], [0], [0], [1], [0, 0, 1, 1], [], []>} : vector<2x128xf32>, vector<128x4xf32>, vector<2x4xf32> -> vector<2x4xf32>
    %9 = arith.mulf %1, %1 : vector<2x128xf32>
    %c0_11 = arith.constant 0 : index
    %c0_12 = arith.constant 0 : index
    %10 = vector.load %arg5[%c0_11, %c0_12] : memref<128x4xf32, #tpu.memory_space<vmem>>, vector<128x4xf32>
    %cst_13 = arith.constant dense<0.000000e+00> : vector<2x4xf32>
    %11 = tpu.matmul %9, %10, %cst_13 {dimension_numbers = #tpu.dot_dimension_numbers<[1], [0], [0], [1], [0, 0, 1, 1], [], []>} : vector<2x128xf32>, vector<128x4xf32>, vector<2x4xf32> -> vector<2x4xf32>
    %cst_14 = arith.constant 1.000000e-24 : f32
    %12 = vector.broadcast %cst_14 : f32 to vector<2x4xf32>
    %13 = arith.maximumf %8, %12 : vector<2x4xf32>
    %14 = math.rsqrt %13 : vector<2x4xf32>
    %cst_15 = arith.constant 1.000000e-24 : f32
    %15 = vector.broadcast %cst_15 : f32 to vector<2x4xf32>
    %16 = arith.maximumf %11, %15 : vector<2x4xf32>
    %17 = math.rsqrt %16 : vector<2x4xf32>
    %18 = arith.mulf %3, %14 : vector<2x4xf32>
    %19 = arith.mulf %5, %17 : vector<2x4xf32>
    %20 = arith.addf %18, %19 : vector<2x4xf32>
    %c0_16 = arith.constant 0 : index
    %21 = memref.load %arg6[%c0_16] : memref<1xf32, #tpu.memory_space<smem>>
    %22 = vector.broadcast %21 : f32 to vector<2x4xf32>
    %23 = arith.addf %20, %22 : vector<2x4xf32>
    %c0_17 = arith.constant 0 : index
    %c0_18 = arith.constant 0 : index
    %24 = vector.load %arg7[%c0_17, %c0_18] : memref<2x4xf32, #tpu.memory_space<vmem>>, vector<2x4xf32>
    tpu.vector_store %arg7[%c0_17, %c0_18], %23 {strides = array<i32>} : memref<2x4xf32, #tpu.memory_space<vmem>>, vector<2x4xf32>,
    return
  }
  func.func @transform_0(%arg0: i32) -> (i32, i32) {
    %c0_i32 = arith.constant 0 : i32
    %c0_i32_0 = arith.constant 0 : i32
    return %arg0, %c0_i32 : i32, i32
  }
  func.func @transform_1(%arg0: i32) -> (i32, i32) {
    %c0_i32 = arith.constant 0 : i32
    %c0_i32_0 = arith.constant 0 : i32
    return %arg0, %c0_i32 : i32, i32
  }
  func.func @transform_2(%arg0: i32) -> (i32, i32) {
    %c0_i32 = arith.constant 0 : i32
    %c0_i32_0 = arith.constant 0 : i32
    %c0_i32_1 = arith.constant 0 : i32
    return %c0_i32, %c0_i32_0 : i32, i32
  }
  func.func @transform_3(%arg0: i32) -> (i32, i32) {
    %c0_i32 = arith.constant 0 : i32
    %c0_i32_0 = arith.constant 0 : i32
    %c0_i32_1 = arith.constant 0 : i32
    return %c0_i32, %c0_i32_0 : i32, i32
  }
  func.func @transform_4(%arg0: i32) -> (i32, i32) {
    %c0_i32 = arith.constant 0 : i32
    %c0_i32_0 = arith.constant 0 : i32
    %c0_i32_1 = arith.constant 0 : i32
    return %c0_i32, %c0_i32_0 : i32, i32
  }
  func.func @transform_5(%arg0: i32) -> i32 {
    %c0_i32 = arith.constant 0 : i32
    %c0_i32_0 = arith.constant 0 : i32
    return %c0_i32 : i32
  }
  func.func @transform_6(%arg0: i32) -> (i32, i32) {
    %c0_i32 = arith.constant 0 : i32
    %c0_i32_0 = arith.constant 0 : i32
    return %arg0, %c0_i32 : i32, i32
  }
}

</mosaic_0001>

<llo_original>
// kernel: anomaly_layer_forward.1
$region0: #{anomaly_layer_forward.1}
  #allocation0 [shape = 'u32[]', space=smem, size = 0x4, offset = 0x4, fixed_abs, tag = 'smem constant byte address 0x4 - core index']
  #allocation1 [shape = 'u32[144,128]{1,0:T(1,128)}', space=vmem, size = 0x12000, scoped, tag = 'internal scratch']
  #allocation2 [shape = 'f32[1]{0:T(128)S(6)}', space=smem, size = 0x200, scoped, tag = 'scoped memory for anomaly_layer_forward.1']
  %s0 = inlined_call_operand.vmem [shape: f32[2,128], index: 0, kind: input, shape index: {}]
  %s1 = inlined_call_operand.vmem [shape: f32[2,128], index: 1, kind: input, shape index: {}]
  %s2 = inlined_call_operand.vmem [shape: f32[128,4], index: 2, kind: input, shape index: {}]
  %s3 = inlined_call_operand.vmem [shape: f32[128,4], index: 3, kind: input, shape index: {}]
  %s4 = inlined_call_operand.vmem [shape: f32[128,4], index: 4, kind: input, shape index: {}]
  %s5 = inlined_call_operand.<no memory space> [shape: f32[1], index: 5, kind: input, shape index: {}]
  %s6 = inlined_call_operand.vmem [shape: f32[2,4], index: 6, kind: output, shape index: {}]
  %s7 = sld [smem:[#allocation0]]
  $region34: #{anomaly_layer_forward.1} parent=0
    _
  %s9 = ssub.s32 1, %s7
  %s10 = scalar_select 0, %s9, %s7
  %11 = sst [smem:[#allocation2]] %s5
  // Predicated region
  $region2: #{anomaly_layer_forward.1} parent=0 // pred_check
    _
  $region3: #{anomaly_layer_forward.1} parent=0 // pred_check_branch
    %13 = sbr.rel (0) target = $region5
  $region4: #{anomaly_layer_forward.1} parent=0 // pred_region
    _
  $region5: #{anomaly_layer_forward.1} parent=0 // pred_fallthru
    _
  // Predicated region
  $region6: #{anomaly_layer_forward.1} parent=0 // pred_check
    _
  $region7: #{anomaly_layer_forward.1} parent=0 // pred_check_branch
    %15 = sbr.rel (0) target = $region9
  $region8: #{anomaly_layer_forward.1} parent=0 // pred_region
    _
  $region9: #{anomaly_layer_forward.1} parent=0 // pred_fallthru
    _
  // Predicated region
  $region10: #{anomaly_layer_forward.1} parent=0 // pred_check
    _
  $region11: #{anomaly_layer_forward.1} parent=0 // pred_check_branch
    %17 = sbr.rel (0) target = $region13
  $region12: #{anomaly_layer_forward.1} parent=0 // pred_region
    _
  $region13: #{anomaly_layer_forward.1} parent=0 // pred_fallthru
    _
  // Predicated region
  $region14: #{anomaly_layer_forward.1} parent=0 // pred_check
    _
  $region15: #{anomaly_layer_forward.1} parent=0 // pred_check_branch
    %19 = sbr.rel (0) target = $region17
  $region16: #{anomaly_layer_forward.1} parent=0 // pred_region
    _
  $region17: #{anomaly_layer_forward.1} parent=0 // pred_fallthru
    _
  // Predicated region
  $region18: #{anomaly_layer_forward.1} parent=0 // pred_check
    _
  $region19: #{anomaly_layer_forward.1} parent=0 // pred_check_branch
    %21 = sbr.rel (0) target = $region21
  $region20: #{anomaly_layer_forward.1} parent=0 // pred_region
    _
  $region21: #{anomaly_layer_forward.1} parent=0 // pred_fallthru
    _
  // Predicated region
  $region22: #{anomaly_layer_forward.1} parent=0 // pred_check
    _
  $region23: #{anomaly_layer_forward.1} parent=0 // pred_check_branch
    %23 = sbr.rel (0) target = $region25
  $region24: #{anomaly_layer_forward.1} parent=0 // pred_region
    _
  $region25: #{anomaly_layer_forward.1} parent=0 // pred_fallthru
    _
  %v24 = vld [vmem:[%s0] sm:$0x3]
  %v25 = vld [vmem:[%s1] sm:$0x3]
  %v26 = vld [vmem:[%s2] sm:$0xff]
  %v27 = vld [vmem:[%s2 + $0x8] sm:$0xff]
  %v28 = vld [vmem:[%s2 + $0x10] sm:$0xff]
  %v29 = vld [vmem:[%s2 + $0x18] sm:$0xff]
  %v30 = vld [vmem:[%s2 + $0x20] sm:$0xff]
  %v31 = vld [vmem:[%s2 + $0x28] sm:$0xff]
  %v32 = vld [vmem:[%s2 + $0x30] sm:$0xff]
  %v33 = vld [vmem:[%s2 + $0x38] sm:$0xff]
  %v34 = vld [vmem:[%s2 + $0x40] sm:$0xff]
  %v35 = vld [vmem:[%s2 + $0x48] sm:$0xff]
  %v36 = vld [vmem:[%s2 + $0x50] sm:$0xff]
  %v37 = vld [vmem:[%s2 + $0x58] sm:$0xff]
  %v38 = vld [vmem:[%s2 + $0x60] sm:$0xff]
  %v39 = vld [vmem:[%s2 + $0x68] sm:$0xff]
  %v40 = vld [vmem:[%s2 + $0x70] sm:$0xff]
  %v41 = vld [vmem:[%s2 + $0x78] sm:$0xff]
  %42 = vmatprep.subr.mxu0 0.0
  %43 = vmatpush1.msra.mxu0 %v26
  %44 = vmatprep.subr.mxu0 0.0
  %45 = vmatpush1.msra.mxu0 %v27
  %46 = vmatprep.subr.mxu0 0.0
  %47 = vmatpush1.msra.mxu0 %v28
  %48 = vmatprep.subr.mxu0 0.0
  %49 = vmatpush1.msra.mxu0 %v29
  %50 = vmatprep.subr.mxu0 0.0
  %51 = vmatpush1.msra.mxu0 %v30
  %52 = vmatprep.subr.mxu0 0.0
  %53 = vmatpush1.msra.mxu0 %v31
  %54 = vmatprep.subr.mxu0 0.0
  %55 = vmatpush1.msra.mxu0 %v32
  %56 = vmatprep.subr.mxu0 0.0
  %57 = vmatpush1.msra.mxu0 %v33
  %58 = vmatprep.subr.mxu0 0.0
  %59 = vmatpush1.msra.mxu0 %v34
  %60 = vmatprep.subr.mxu0 0.0
  %61 = vmatpush1.msra.mxu0 %v35
  %62 = vmatprep.subr.mxu0 0.0
  %63 = vmatpush1.msra.mxu0 %v36
  %64 = vmatprep.subr.mxu0 0.0
  %65 = vmatpush1.msra.mxu0 %v37
  %66 = vmatprep.subr.mxu0 0.0
  %67 = vmatpush1.msra.mxu0 %v38
  %68 = vmatprep.subr.mxu0 0.0
  %69 = vmatpush1.msra.mxu0 %v39
  %70 = vmatprep.subr.mxu0 0.0
  %71 = vmatpush1.msra.mxu0 %v40
  %72 = vmatprep.subr.mxu0 0.0
  %73 = vmatpush1.msra.mxu0 %v41
  %74 = vmatprep.subr.mxu0 0.0
  %75 = vmatpush1.msra.mxu0 0.0
  %76 = vmatprep.subr.mxu0 0.0
  %77 = vmatpush1.msra.mxu0 0.0
  %78 = vmatprep.subr.mxu0 0.0
  %79 = vmatpush1.msra.mxu0 0.0
  %80 = vmatprep.subr.mxu0 0.0
  %81 = vmatpush1.msra.mxu0 0.0
  %82 = vmatprep.subr.mxu0 0.0
  %83 = vmatpush1.msra.mxu0 0.0
  %84 = vmatprep.subr.mxu0 0.0
  %85 = vmatpush1.msra.mxu0 0.0
  %86 = vmatprep.subr.mxu0 0.0
  %87 = vmatpush1.msra.mxu0 0.0
  %88 = vmatprep.subr.mxu0 0.0
  %89 = vmatpush1.msra.mxu0 0.0
  %90 = vmatprep.subr.mxu0 0.0
  %91 = vmatpush1.msra.mxu0 0.0
  %92 = vmatprep.subr.mxu0 0.0
  %93 = vmatpush1.msra.mxu0 0.0
  %94 = vmatprep.subr.mxu0 0.0
  %95 = vmatpush1.msra.mxu0 0.0
  %96 = vmatprep.subr.mxu0 0.0
  %97 = vmatpush1.msra.mxu0 0.0
  %98 = vmatprep.subr.mxu0 0.0
  %99 = vmatpush1.msra.mxu0 0.0
  %100 = vmatprep.subr.mxu0 0.0
  %101 = vmatpush1.msra.mxu0 0.0
  %102 = vmatprep.subr.mxu0 0.0
  %103 = vmatpush1.msra.mxu0 0.0
  %104 = vmatprep.subr.mxu0 0.0
  %105 = vmatpush1.msra.mxu0 0.0
  %106 = vmatprep.mubr.f32.mxu0 0.0
  %107 = vmatmul.mubr.f32.gmra.mrb[0].mxu0 %v24
  %v108 = vpop.f32.mrb[0].mxu0
  %v109 = vadd.f32 0.0, %v108
  %v110 = vpop.f32.mrb[0].mxu0
  %111 = vdwg.mxu0
  %v112 = vld [vmem:[%s3] sm:$0xff]
  %v113 = vld [vmem:[%s3 + $0x8] sm:$0xff]
  %v114 = vld [vmem:[%s3 + $0x10] sm:$0xff]
  %v115 = vld [vmem:[%s3 + $0x18] sm:$0xff]
  %v116 = vld [vmem:[%s3 + $0x20] sm:$0xff]
  %v117 = vld [vmem:[%s3 + $0x28] sm:$0xff]
  %v118 = vld [vmem:[%s3 + $0x30] sm:$0xff]
  %v119 = vld [vmem:[%s3 + $0x38] sm:$0xff]
  %v120 = vld [vmem:[%s3 + $0x40] sm:$0xff]
  %v121 = vld [vmem:[%s3 + $0x48] sm:$0xff]
  %v122 = vld [vmem:[%s3 + $0x50] sm:$0xff]
  %v123 = vld [vmem:[%s3 + $0x58] sm:$0xff]
  %v124 = vld [vmem:[%s3 + $0x60] sm:$0xff]
  %v125 = vld [vmem:[%s3 + $0x68] sm:$0xff]
  %v126 = vld [vmem:[%s3 + $0x70] sm:$0xff]
  %v127 = vld [vmem:[%s3 + $0x78] sm:$0xff]
  %128 = vmatprep.subr.mxu0 0.0
  %129 = vmatpush1.msra.mxu0 %v112
  %130 = vmatprep.subr.mxu0 0.0
  %131 = vmatpush1.msra.mxu0 %v113
  %132 = vmatprep.subr.mxu0 0.0
  %133 = vmatpush1.msra.mxu0 %v114
  %134 = vmatprep.subr.mxu0 0.0
  %135 = vmatpush1.msra.mxu0 %v115
  %136 = vmatprep.subr.mxu0 0.0
  %137 = vmatpush1.msra.mxu0 %v116
  %138 = vmatprep.subr.mxu0 0.0
  %139 = vmatpush1.msra.mxu0 %v117
  %140 = vmatprep.subr.mxu0 0.0
  %141 = vmatpush1.msra.mxu0 %v118
  %142 = vmatprep.subr.mxu0 0.0
  %143 = vmatpush1.msra.mxu0 %v119
  %144 = vmatprep.subr.mxu0 0.0
  %145 = vmatpush1.msra.mxu0 %v120
  %146 = vmatprep.subr.mxu0 0.0
  %147 = vmatpush1.msra.mxu0 %v121
  %148 = vmatprep.subr.mxu0 0.0
  %149 = vmatpush1.msra.mxu0 %v122
  %150 = vmatprep.subr.mxu0 0.0
  %151 = vmatpush1.msra.mxu0 %v123
  %152 = vmatprep.subr.mxu0 0.0
  %153 = vmatpush1.msra.mxu0 %v124
  %154 = vmatprep.subr.mxu0 0.0
  %155 = vmatpush1.msra.mxu0 %v125
  %156 = vmatprep.subr.mxu0 0.0
  %157 = vmatpush1.msra.mxu0 %v126
  %158 = vmatprep.subr.mxu0 0.0
  %159 = vmatpush1.msra.mxu0 %v127
  %160 = vmatprep.subr.mxu0 0.0
  %161 = vmatpush1.msra.mxu0 0.0
  %162 = vmatprep.subr.mxu0 0.0
  %163 = vmatpush1.msra.mxu0 0.0
  %164 = vmatprep.subr.mxu0 0.0
  %165 = vmatpush1.msra.mxu0 0.0
  %166 = vmatprep.subr.mxu0 0.0
  %167 = vmatpush1.msra.mxu0 0.0
  %168 = vmatprep.subr.mxu0 0.0
  %169 = vmatpush1.msra.mxu0 0.0
  %170 = vmatprep.subr.mxu0 0.0
  %171 = vmatpush1.msra.mxu0 0.0
  %172 = vmatprep.subr.mxu0 0.0
  %173 = vmatpush1.msra.mxu0 0.0
  %174 = vmatprep.subr.mxu0 0.0
  %175 = vmatpush1.msra.mxu0 0.0
  %176 = vmatprep.subr.mxu0 0.0
  %177 = vmatpush1.msra.mxu0 0.0
  %178 = vmatprep.subr.mxu0 0.0
  %179 = vmatpush1.msra.mxu0 0.0
  %180 = vmatprep.subr.mxu0 0.0
  %181 = vmatpush1.msra.mxu0 0.0
  %182 = vmatprep.subr.mxu0 0.0
  %183 = vmatpush1.msra.mxu0 0.0
  %184 = vmatprep.subr.mxu0 0.0
  %185 = vmatpush1.msra.mxu0 0.0
  %186 = vmatprep.subr.mxu0 0.0
  %187 = vmatpush1.msra.mxu0 0.0
  %188 = vmatprep.subr.mxu0 0.0
  %189 = vmatpush1.msra.mxu0 0.0
  %190 = vmatprep.subr.mxu0 0.0
  %191 = vmatpush1.msra.mxu0 0.0
  %192 = vmatprep.mubr.f32.mxu0 0.0
  %193 = vmatmul.mubr.f32.gmra.mrb[0].mxu0 %v25
  %v194 = vpop.f32.mrb[0].mxu0
  %v195 = vadd.f32 0.0, %v194
  %v196 = vpop.f32.mrb[0].mxu0
  %197 = vdwg.mxu0
  %v198 = vmul.f32 %v24, %v24
  %v199 = vld [vmem:[%s4] sm:$0xff]
  %v200 = vld [vmem:[%s4 + $0x8] sm:$0xff]
  %v201 = vld [vmem:[%s4 + $0x10] sm:$0xff]
  %v202 = vld [vmem:[%s4 + $0x18] sm:$0xff]
  %v203 = vld [vmem:[%s4 + $0x20] sm:$0xff]
  %v204 = vld [vmem:[%s4 + $0x28] sm:$0xff]
  %v205 = vld [vmem:[%s4 + $0x30] sm:$0xff]
  %v206 = vld [vmem:[%s4 + $0x38] sm:$0xff]
  %v207 = vld [vmem:[%s4 + $0x40] sm:$0xff]
  %v208 = vld [vmem:[%s4 + $0x48] sm:$0xff]
  %v209 = vld [vmem:[%s4 + $0x50] sm:$0xff]
  %v210 = vld [vmem:[%s4 + $0x58] sm:$0xff]
  %v211 = vld [vmem:[%s4 + $0x60] sm:$0xff]
  %v212 = vld [vmem:[%s4 + $0x68] sm:$0xff]
  %v213 = vld [vmem:[%s4 + $0x70] sm:$0xff]
  %v214 = vld [vmem:[%s4 + $0x78] sm:$0xff]
  %215 = vmatprep.subr.mxu0 0.0
  %216 = vmatpush1.msra.mxu0 %v199
  %217 = vmatprep.subr.mxu0 0.0
  %218 = vmatpush1.msra.mxu0 %v200
  %219 = vmatprep.subr.mxu0 0.0
  %220 = vmatpush1.msra.mxu0 %v201
  %221 = vmatprep.subr.mxu0 0.0
  %222 = vmatpush1.msra.mxu0 %v202
  %223 = vmatprep.subr.mxu0 0.0
  %224 = vmatpush1.msra.mxu0 %v203
  %225 = vmatprep.subr.mxu0 0.0
  %226 = vmatpush1.msra.mxu0 %v204
  %227 = vmatprep.subr.mxu0 0.0
  %228 = vmatpush1.msra.mxu0 %v205
  %229 = vmatprep.subr.mxu0 0.0
  %230 = vmatpush1.msra.mxu0 %v206
  %231 = vmatprep.subr.mxu0 0.0
  %232 = vmatpush1.msra.mxu0 %v207
  %233 = vmatprep.subr.mxu0 0.0
  %234 = vmatpush1.msra.mxu0 %v208
  %235 = vmatprep.subr.mxu0 0.0
  %236 = vmatpush1.msra.mxu0 %v209
  %237 = vmatprep.subr.mxu0 0.0
  %238 = vmatpush1.msra.mxu0 %v210
  %239 = vmatprep.subr.mxu0 0.0
  %240 = vmatpush1.msra.mxu0 %v211
  %241 = vmatprep.subr.mxu0 0.0
  %242 = vmatpush1.msra.mxu0 %v212
  %243 = vmatprep.subr.mxu0 0.0
  %244 = vmatpush1.msra.mxu0 %v213
  %245 = vmatprep.subr.mxu0 0.0
  %246 = vmatpush1.msra.mxu0 %v214
  %247 = vmatprep.subr.mxu0 0.0
  %248 = vmatpush1.msra.mxu0 0.0
  %249 = vmatprep.subr.mxu0 0.0
  %250 = vmatpush1.msra.mxu0 0.0
  %251 = vmatprep.subr.mxu0 0.0
  %252 = vmatpush1.msra.mxu0 0.0
  %253 = vmatprep.subr.mxu0 0.0
  %254 = vmatpush1.msra.mxu0 0.0
  %255 = vmatprep.subr.mxu0 0.0
  %256 = vmatpush1.msra.mxu0 0.0
  %257 = vmatprep.subr.mxu0 0.0
  %258 = vmatpush1.msra.mxu0 0.0
  %259 = vmatprep.subr.mxu0 0.0
  %260 = vmatpush1.msra.mxu0 0.0
  %261 = vmatprep.subr.mxu0 0.0
  %262 = vmatpush1.msra.mxu0 0.0
  %263 = vmatprep.subr.mxu0 0.0
  %264 = vmatpush1.msra.mxu0 0.0
  %265 = vmatprep.subr.mxu0 0.0
  %266 = vmatpush1.msra.mxu0 0.0
  %267 = vmatprep.subr.mxu0 0.0
  %268 = vmatpush1.msra.mxu0 0.0
  %269 = vmatprep.subr.mxu0 0.0
  %270 = vmatpush1.msra.mxu0 0.0
  %271 = vmatprep.subr.mxu0 0.0
  %272 = vmatpush1.msra.mxu0 0.0
  %273 = vmatprep.subr.mxu0 0.0
  %274 = vmatpush1.msra.mxu0 0.0
  %275 = vmatprep.subr.mxu0 0.0
  %276 = vmatpush1.msra.mxu0 0.0
  %277 = vmatprep.subr.mxu0 0.0
  %278 = vmatpush1.msra.mxu0 0.0
  %279 = vmatprep.mubr.f32.mxu0 0.0
  %280 = vmatmul.mubr.f32.gmra.mrb[0].mxu0 %v198
  %v281 = vpop.f32.mrb[0].mxu0
  %v282 = vadd.f32 0.0, %v281
  %v283 = vpop.f32.mrb[0].mxu0
  %284 = vdwg.mxu0
  %v285 = vmul.f32 %v25, %v25
  %286 = vmatprep.subr.mxu0 0.0
  %287 = vmatpush1.msra.mxu0 %v199
  %288 = vmatprep.subr.mxu0 0.0
  %289 = vmatpush1.msra.mxu0 %v200
  %290 = vmatprep.subr.mxu0 0.0
  %291 = vmatpush1.msra.mxu0 %v201
  %292 = vmatprep.subr.mxu0 0.0
  %293 = vmatpush1.msra.mxu0 %v202
  %294 = vmatprep.subr.mxu0 0.0
  %295 = vmatpush1.msra.mxu0 %v203
  %296 = vmatprep.subr.mxu0 0.0
  %297 = vmatpush1.msra.mxu0 %v204
  %298 = vmatprep.subr.mxu0 0.0
  %299 = vmatpush1.msra.mxu0 %v205
  %300 = vmatprep.subr.mxu0 0.0
  %301 = vmatpush1.msra.mxu0 %v206
  %302 = vmatprep.subr.mxu0 0.0
  %303 = vmatpush1.msra.mxu0 %v207
  %304 = vmatprep.subr.mxu0 0.0
  %305 = vmatpush1.msra.mxu0 %v208
  %306 = vmatprep.subr.mxu0 0.0
  %307 = vmatpush1.msra.mxu0 %v209
  %308 = vmatprep.subr.mxu0 0.0
  %309 = vmatpush1.msra.mxu0 %v210
  %310 = vmatprep.subr.mxu0 0.0
  %311 = vmatpush1.msra.mxu0 %v211
  %312 = vmatprep.subr.mxu0 0.0
  %313 = vmatpush1.msra.mxu0 %v212
  %314 = vmatprep.subr.mxu0 0.0
  %315 = vmatpush1.msra.mxu0 %v213
  %316 = vmatprep.subr.mxu0 0.0
  %317 = vmatpush1.msra.mxu0 %v214
  %318 = vmatprep.subr.mxu0 0.0
  %319 = vmatpush1.msra.mxu0 0.0
  %320 = vmatprep.subr.mxu0 0.0
  %321 = vmatpush1.msra.mxu0 0.0
  %322 = vmatprep.subr.mxu0 0.0
  %323 = vmatpush1.msra.mxu0 0.0
  %324 = vmatprep.subr.mxu0 0.0
  %325 = vmatpush1.msra.mxu0 0.0
  %326 = vmatprep.subr.mxu0 0.0
  %327 = vmatpush1.msra.mxu0 0.0
  %328 = vmatprep.subr.mxu0 0.0
  %329 = vmatpush1.msra.mxu0 0.0
  %330 = vmatprep.subr.mxu0 0.0
  %331 = vmatpush1.msra.mxu0 0.0
  %332 = vmatprep.subr.mxu0 0.0
  %333 = vmatpush1.msra.mxu0 0.0
  %334 = vmatprep.subr.mxu0 0.0
  %335 = vmatpush1.msra.mxu0 0.0
  %336 = vmatprep.subr.mxu0 0.0
  %337 = vmatpush1.msra.mxu0 0.0
  %338 = vmatprep.subr.mxu0 0.0
  %339 = vmatpush1.msra.mxu0 0.0
  %340 = vmatprep.subr.mxu0 0.0
  %341 = vmatpush1.msra.mxu0 0.0
  %342 = vmatprep.subr.mxu0 0.0
  %343 = vmatpush1.msra.mxu0 0.0
  %344 = vmatprep.subr.mxu0 0.0
  %345 = vmatpush1.msra.mxu0 0.0
  %346 = vmatprep.subr.mxu0 0.0
  %347 = vmatpush1.msra.mxu0 0.0
  %348 = vmatprep.subr.mxu0 0.0
  %349 = vmatpush1.msra.mxu0 0.0
  %350 = vmatprep.mubr.f32.mxu0 0.0
  %351 = vmatmul.mubr.f32.gmra.mrb[0].mxu0 %v285
  %v352 = vpop.f32.mrb[0].mxu0
  %v353 = vadd.f32 0.0, %v352
  %v354 = vpop.f32.mrb[0].mxu0
  %355 = vdwg.mxu0
  %v356 = vmax.f32 %v282, 1e-24
  %v357 = vrsqrt.pop %v356
  %v358 = vmax.f32 %v353, 1e-24
  %v359 = vrsqrt.pop %v358
  %v360 = vmul.f32 %v109, %v357
  %v361 = vmul.f32 %v195, %v359
  %v362 = vadd.f32 %v360, %v361
  %s363 = sld [smem:[#allocation2]]
  %v364 = vstv %s363
  %v365 = vadd.f32 %v362, %v364
  %vm366 = vcmask 25600
  %367 = vst.msk [vmem:[%s6] sm:$0x3] %vm366, %v365
  // Predicated region
  $region26: #{anomaly_layer_forward.1} parent=0 // pred_check
    _
  $region27: #{anomaly_layer_forward.1} parent=0 // pred_check_branch
    %369 = sbr.rel (0) target = $region29
  $region28: #{anomaly_layer_forward.1} parent=0 // pred_region
    _
  $region29: #{anomaly_layer_forward.1} parent=0 // pred_fallthru
    _
  // Predicated region
  $region30: #{anomaly_layer_forward.1} parent=0 // pred_check
    _
  $region31: #{anomaly_layer_forward.1} parent=0 // pred_check_branch
    %371 = sbr.rel (0) target = $region33
  $region32: #{anomaly_layer_forward.1} parent=0 // pred_region
    _
  $region33: #{anomaly_layer_forward.1} parent=0 // pred_fallthru
    _

</llo_original>
